<compile_context>
chip_gen: v5e
topology: v5e:2x2
jax: 0.10.0
libtpu: 0.0.40
codegen_flags: <defaults>
</compile_context>

<pallas_src>
import math

import jax
import jax.numpy as jnp
from jax import lax
from jax.experimental import pallas as pl
from jax.experimental.pallas import tpu as pltpu

_LOG_2PI = math.log(2.0 * math.pi)
_LANES = 128
_TARGET_BLOCK_BYTES = 4 * 1024 * 1024   # ~4 MiB input block per grid step


# ----------------------------------------------------------------------------
# Small helpers
# ----------------------------------------------------------------------------
def _round_up(x, m):
    return ((x + m - 1) // m) * m


def _pick_tile_rows(rows, lane_width, itemsize, block_bytes):
    """Row tile: == rows when rows <= 8 (full-dim block), otherwise a multiple
    of 8 that (a) targets ~block_bytes, (b) never exceeds rows, and (c) leaves
    >= 2 grid steps so ("parallel",) can shard across v7x's two TensorCores."""
    if rows <= 8:
        return rows
    t = max(8, (block_bytes // (lane_width * itemsize)) // 8 * 8)
    return min(t, _round_up(-(-rows // 2), 8))


def _as_key(key_or_seed):
    if isinstance(key_or_seed, int):
        return jax.random.PRNGKey(key_or_seed)
    return key_or_seed


def _seed_words(key):
    """Two 32-bit seed words for the on-chip PRNG (no 31-bit collapse)."""
    arr = jnp.asarray(key)
    if jnp.issubdtype(arr.dtype, jax.dtypes.prng_key):
        arr = jax.random.key_data(key)
    arr = arr.reshape(-1).astype(jnp.uint32)
    if arr.size < 2:
        arr = jnp.concatenate([arr, arr ^ jnp.uint32(0x9E3779B9)])
    return lax.bitcast_convert_type(arr[:2], jnp.int32)


# ----------------------------------------------------------------------------
# Kernels
# ----------------------------------------------------------------------------
def _logprob_kernel(z_ref, out_ref):
    """out[r, g] = log N(sample r*G+g | 0, I_M) for a lane-packed z block.

    z_ref:   (TILE_R, L) input block, L = G*M lane-packed latents
    out_ref: (TILE_R, G) f32
    """
    L = z_ref.shape[-1]
    G = out_ref.shape[-1]
    M = L // G
    z = z_ref[...].astype(jnp.float32)            # cast in-kernel (VPU)
    sq = z * z                                     # VPU

    # Segment selector generated in-kernel (tiny: L*G elems, removes a DMA
    # stream); the -0.5 is folded into the selector values.
    lane = lax.broadcasted_iota(jnp.int32, (L, G), 0)
    seg = lax.broadcasted_iota(jnp.int32, (L, G), 1)
    in_seg = (lane >= seg * M) & (lane < (seg + 1) * M)
    sel = jnp.where(in_seg, -0.5, 0.0).astype(jnp.bfloat16)

    # Per-sample sum of squares on the otherwise-idle MXU.  bf16 operands keep
    # the MXU to a single pass (v7x); f32 accumulation keeps the error well
    # below 1e-3 relative.
    ssq = jnp.dot(sq.astype(jnp.bfloat16), sel,
                  preferred_element_type=jnp.float32)
    out_ref[...] = ssq - (0.5 * M * _LOG_2PI)


def _sample_kernel(seed_ref, out_ref):
    """Fill out_ref with standard-normal draws from the on-chip PRNG."""
    # Hash the grid position into the seed so neighbouring tiles do not use
    # consecutive-integer seeds (decorrelated, reproducible per tile).
    pid = pl.program_id(0)
    mixed = (pid + jnp.int32(1)) * jnp.int32(-1640531527)   # 0x9E3779B9, wraps
    pltpu.prng_seed(seed_ref[0], seed_ref[1], mixed)
    out_ref[...] = pltpu.stateful_normal(out_ref.shape, out_ref.dtype)


# ----------------------------------------------------------------------------
# Pallas wrappers
# ----------------------------------------------------------------------------
def standard_normal_log_prob(z, M, *, block_bytes=_TARGET_BLOCK_BYTES):
    """log prob of Independent(Normal(0, 1), 1) over the last dim of z."""
    if z.shape[-1] != M:
        raise ValueError(f"last dim of z must be M={M}, got {z.shape}")
    lead = z.shape[:-1]
    B = math.prod(lead)
    if B == 0:
        return jnp.zeros(lead, jnp.float32)
    zf = z.reshape(B, M)

    # Lane packing: G samples per row; tail lanes (if 128 % M != 0) simply
    # stay unused in the vreg -- no lane pad needed because the block lane dim
    # equals the full array dim.
    G = _LANES // M if M <= _LANES else 1
    L = G * M
    R = -(-B // G)                                # packed rows
    if R * G != B:
        # Pad only the < G trailing samples needed to form whole packed rows.
        zf = jnp.pad(zf, ((0, R * G - B), (0, 0)))
    zp = zf.reshape(R, L)                         # row-major -> free reshape

    itemsize = jnp.dtype(zp.dtype).itemsize
    tile_r = _pick_tile_rows(R, L, itemsize, block_bytes)
    grid = pl.cdiv(R, tile_r)                     # ragged last tile is masked

    # VMEM budget: double-buffered input + f32/bf16 intermediates + the
    # lane-padded (tile_r, 128) output window, double-buffered, plus slack.
    vmem_limit = int(2 * tile_r * L * itemsize + 6 * tile_r * L
                     + 2 * tile_r * _LANES * 4 + (2 << 20))

    out = pl.pallas_call(
        _logprob_kernel,
        out_shape=jax.ShapeDtypeStruct((R, G), jnp.float32),
        grid=(grid,),
        in_specs=[pl.BlockSpec((tile_r, L), lambda i: (i, 0))],
        out_specs=pl.BlockSpec((tile_r, G), lambda i: (i, 0)),
        compiler_params=pltpu.CompilerParams(
            dimension_semantics=("parallel",),
            vmem_limit_bytes=vmem_limit,
        ),
        cost_estimate=pl.CostEstimate(
            flops=R * L + 2 * R * L * G + R * G,
            transcendentals=0,
            bytes_accessed=R * L * itemsize + R * G * 4,
        ),
    )(zp)

    flat = out.reshape(-1)
    lp = flat if R * G == B else flat[:B]
    return lp.reshape(lead)


def _pallas_standard_normal(seed_words, n, block_bytes):
    R = -(-n // _LANES)
    tile_r = _pick_tile_rows(R, _LANES, 4, block_bytes)
    grid = pl.cdiv(R, tile_r)
    out = pl.pallas_call(
        _sample_kernel,
        out_shape=jax.ShapeDtypeStruct((R, _LANES), jnp.float32),
        grid_spec=pltpu.PrefetchScalarGridSpec(
            num_scalar_prefetch=1,
            grid=(grid,),
            in_specs=[],
            out_specs=pl.BlockSpec((tile_r, _LANES), lambda i, seeds: (i, 0)),
        ),
        compiler_params=pltpu.CompilerParams(
            dimension_semantics=("parallel",),
        ),
        cost_estimate=pl.CostEstimate(
            flops=0,
            transcendentals=3 * R * _LANES,       # ~2-3 per drawn element
            bytes_accessed=R * _LANES * 4,
        ),
    )(seed_words)
    flat = out.reshape(-1)
    return flat if flat.size == n else flat[:n]


def standard_normal_sample(key_or_seed, shape, *, block_bytes=_TARGET_BLOCK_BYTES):
    """Draw N(0, 1) samples of `shape` (on-chip PRNG on TPU, XLA RNG elsewhere)."""
    shape = tuple(shape)
    n = math.prod(shape)
    if n == 0:
        return jnp.zeros(shape, jnp.float32)
    key = _as_key(key_or_seed)
    if jax.default_backend() == "tpu":
        try:
            return _pallas_standard_normal(_seed_words(key), n,
                                           block_bytes).reshape(shape)
        except Exception:
            # Defensive: e.g. forced interpret mode without a PRNG lowering.
            pass
    # TODO(synk): pltpu.prng_seed / pltpu.stateful_normal have no CPU/interpret
    # lowering; off-TPU sampling uses XLA's RNG (identical distribution).
    return jax.random.normal(key, shape, dtype=jnp.float32)


# ----------------------------------------------------------------------------
# Module-equivalent classes
# ----------------------------------------------------------------------------
class IndependentStandardNormal:
    """Pallas-backed stand-in for td.Independent(td.Normal(mean, std), 1) with
    the module's frozen mean=0 / std=1 parameters (compute paths specialised)."""

    def __init__(self, M, mean, std):
        self.M = M
        self.mean = mean      # kept for API parity with the torch distribution
        self.std = std

    def log_prob(self, z):
        return standard_normal_log_prob(z, self.M)

    def sample(self, key_or_seed=0, sample_shape=()):
        return standard_normal_sample(key_or_seed,
                                      tuple(sample_shape) + (self.M,))


class GaussianPrior:
    """JAX/Pallas port of the PyTorch GaussianPrior module."""

    def __init__(self, M):
        self.M = M
        # Exactly as in the PyTorch __init__ (non-trainable zeros / ones).
        self.mean = jnp.zeros((M,), dtype=jnp.float32)
        self.std = jnp.ones((M,), dtype=jnp.float32)

    def forward(self):
        return IndependentStandardNormal(self.M, self.mean, self.std)

    __call__ = forward


# ----------------------------------------------------------------------------
# Main
# ----------------------------------------------------------------------------
if __name__ == "__main__":
    M = 32   # latent dimension
    B = 8    # batch of latent samples to evaluate

    prior_module = GaussianPrior(M)
    prior = prior_module()                       # forward() -> distribution

    key = jax.random.PRNGKey(0)
    k_z, k_z2, k_z3, k_s, k_s2 = jax.random.split(key, 5)

    # --- Pallas log_prob vs plain-JAX reference -----------------------------
    z = jax.random.normal(k_z, (B, M), dtype=jnp.float32)
    lp = jax.block_until_ready(prior.log_prob(z))
    lp_ref = jnp.sum(-0.5 * z * z - 0.5 * _LOG_2PI, axis=-1)
    assert lp.shape == (B,)
    assert jnp.allclose(lp, lp_ref, rtol=5e-3, atol=5e-3), (lp, lp_ref)

    # Multi-tile grid + ragged last tile + trailing-sample pad/slice path.
    z2 = jax.random.normal(k_z2, (50, M), dtype=jnp.float32)
    lp2 = jax.block_until_ready(standard_normal_log_prob(z2, M, block_bytes=4096))
    lp2_ref = jnp.sum(-0.5 * z2 * z2 - 0.5 * _LOG_2PI, axis=-1)
    assert lp2.shape == (50,)
    assert jnp.allclose(lp2, lp2_ref, rtol=5e-3, atol=5e-3)

    # M that does not divide 128 (lane-packed with unused tail lanes).
    prior48 = GaussianPrior(48)()
    z3 = jax.random.normal(k_z3, (10, 48), dtype=jnp.float32)
    lp3 = jax.block_until_ready(prior48.log_prob(z3))
    lp3_ref = jnp.sum(-0.5 * z3 * z3 - 0.5 * _LOG_2PI, axis=-1)
    assert lp3.shape == (10,)
    assert jnp.allclose(lp3, lp3_ref, rtol=5e-3, atol=5e-3)

    # --- sample (on-chip PRNG kernel on TPU, XLA RNG fallback elsewhere) ----
    s = jax.block_until_ready(prior.sample(k_s, sample_shape=(B,)))
    assert s.shape == (B, M)
    assert bool(jnp.all(jnp.isfinite(s)))
    assert abs(float(jnp.mean(s))) < 0.5
    assert 0.6 < float(jnp.std(s)) < 1.5

    s2 = jax.block_until_ready(prior.sample(k_s2, sample_shape=(40,)))
    assert s2.shape == (40, M)
    assert bool(jnp.all(jnp.isfinite(s2)))
    assert abs(float(jnp.mean(s2))) < 0.3
    assert 0.7 < float(jnp.std(s2)) < 1.3

    print("KERNEL_OK")
</pallas_src>

<mosaic_0001>
module attributes {stable_mosaic.version = 11 : i64} {
  func.func @_logprob_kernel(%arg0: i32, %arg1: memref<2x128xf32, #tpu.memory_space<vmem>>, %arg2: memref<2x4xf32, #tpu.memory_space<vmem>>) attributes {dimension_semantics = [#tpu.dimension_semantics<parallel>], iteration_bounds = array<i64: 1>, scalar_prefetch = 0 : i64, scratch_operands = 0 : i64, tpu.core_type = #tpu.core_type<tc>, window_params = [{transform_indices = @transform_0, window_bounds = array<i64: 2, 128>}, {transform_indices = @transform_1, window_bounds = array<i64: 2, 4>}]} {
    %c0 = arith.constant 0 : index
    %c0_0 = arith.constant 0 : index
    %0 = vector.load %arg1[%c0, %c0_0] : memref<2x128xf32, #tpu.memory_space<vmem>>, vector<2x128xf32>
    %1 = arith.mulf %0, %0 : vector<2x128xf32>
    %2 = tpu.iota {dimensions = array<i32: 0>} : vector<128x4xi32>
    %3 = tpu.iota {dimensions = array<i32: 1>} : vector<128x4xi32>
    %c32_i32 = arith.constant 32 : i32
    %4 = vector.broadcast %c32_i32 : i32 to vector<128x4xi32>
    %5 = arith.muli %3, %4 : vector<128x4xi32>
    %6 = arith.cmpi sge, %2, %5 : vector<128x4xi32>
    %c1_i32 = arith.constant 1 : i32
    %7 = vector.broadcast %c1_i32 : i32 to vector<128x4xi32>
    %8 = arith.addi %3, %7 : vector<128x4xi32>
    %c32_i32_1 = arith.constant 32 : i32
    %9 = vector.broadcast %c32_i32_1 : i32 to vector<128x4xi32>
    %10 = arith.muli %8, %9 : vector<128x4xi32>
    %11 = arith.cmpi slt, %2, %10 : vector<128x4xi32>
    %12 = arith.andi %6, %11 : vector<128x4xi1>
    %cst = arith.constant -5.000000e-01 : f32
    %cst_2 = arith.constant 0.000000e+00 : f32
    %13 = vector.broadcast %cst : f32 to vector<128x4xf32>
    %14 = vector.broadcast %cst_2 : f32 to vector<128x4xf32>
    %15 = arith.select %12, %13, %14 : vector<128x4xi1>, vector<128x4xf32>
    %16 = arith.truncf %15 : vector<128x4xf32> to vector<128x4xbf16>
    %17 = arith.truncf %1 : vector<2x128xf32> to vector<2x128xbf16>
    %cst_3 = arith.constant dense<0.000000e+00> : vector<2x4xf32>
    %18 = tpu.matmul %17, %16, %cst_3 {dimension_numbers = #tpu.dot_dimension_numbers<[1], [0], [0], [1], [0, 0, 1, 1], [], []>} : vector<2x128xbf16>, vector<128x4xbf16>, vector<2x4xf32> -> vector<2x4xf32>
    %cst_4 = arith.constant 29.4060326 : f32
    %19 = vector.broadcast %cst_4 : f32 to vector<2x4xf32>
    %20 = arith.subf %18, %19 : vector<2x4xf32>
    %c0_5 = arith.constant 0 : index
    %c0_6 = arith.constant 0 : index
    %21 = vector.load %arg2[%c0_5, %c0_6] : memref<2x4xf32, #tpu.memory_space<vmem>>, vector<2x4xf32>
    tpu.vector_store %arg2[%c0_5, %c0_6], %20 {strides = array<i32>} : memref<2x4xf32, #tpu.memory_space<vmem>>, vector<2x4xf32>,
    return
  }
  func.func @transform_0(%arg0: i32) -> (i32, i32) {
    %c0_i32 = arith.constant 0 : i32
    %c0_i32_0 = arith.constant 0 : i32
    return %arg0, %c0_i32 : i32, i32
  }
  func.func @transform_1(%arg0: i32) -> (i32, i32) {
    %c0_i32 = arith.constant 0 : i32
    %c0_i32_0 = arith.constant 0 : i32
    return %arg0, %c0_i32 : i32, i32
  }
}

</mosaic_0001>

<llo_original>
// kernel: tpu_custom_call.1
$region0: #{tpu_custom_call.1}
  #allocation0 [shape = 'u32[]', space=smem, size = 0x4, offset = 0x4, fixed_abs, tag = 'smem constant byte address 0x4 - core index']
  #allocation1 [shape = 'u32[72,128]{1,0:T(1,128)}', space=vmem, size = 0x9000, scoped, tag = 'internal scratch']
  %s0 = inlined_call_operand.hbm [shape: f32[2,128], index: 0, kind: input, shape index: {}]
  %s1 = inlined_call_operand.hbm [shape: f32[2,4], index: 1, kind: output, shape index: {}]
  %s2 = sld [smem:[#allocation0]]
  $region18: #{tpu_custom_call.1} parent=0
    _
  %s4 = ssub.s32 1, %s2
  %s5 = scalar_select 0, %s4, %s2
  $region1: #{tpu_custom_call.1} parent=0
    #allocation2 [shape = 'u8[1024]{0}', space=vmem, size = 0x400, scoped, tag = 'input window, operand 0, single buffered']
    #allocation3 [shape = 's32[1]{0}', space=sflag, size = 0x4, scoped, tag = 'scoped memory for tpu_custom_call.1']
    #allocation4 [shape = 's32[1]{0}', space=sflag, size = 0x4, scoped, tag = 'scoped memory for tpu_custom_call.1']
    #allocation5 [shape = 'u8[1024]{0}', space=vmem, size = 0x400, scoped, tag = 'output window, operand 0, single buffered']
    %6 = vsyncpa [#allocation3], 0
    %7 = vsyncpa [#allocation4], 0
    // Predicated region
    $region2: #{tpu_custom_call.1} parent=1 // pred_check
      _
    $region3: #{tpu_custom_call.1} parent=1 // pred_check_branch
      %9 = sbr.rel (0) target = $region5
    $region4: #{tpu_custom_call.1} parent=1 // pred_region
      %11 = vsyncadd [#allocation3], 0
      %s13 = sshll.u32 %s0, 4
      %s14 = int_to_ptr.hbm [resolvable:$true] %s13
      %s15 = sshll.u32 [#allocation2], 4
      %s16 = int_to_ptr.vmem [resolvable:$true] %s15
      %18 = dma.hbm_to_vmem [thread:$0]  %s14, 32, %s16, [#allocation3]
    $region5: #{tpu_custom_call.1} parent=1 // pred_fallthru
      _
    // Predicated region
    $region6: #{tpu_custom_call.1} parent=1 // pred_check
      _
    $region7: #{tpu_custom_call.1} parent=1 // pred_check_branch
      %20 = sbr.rel (0) target = $region9
    $region8: #{tpu_custom_call.1} parent=1 // pred_region
      %22 = dma.done [#allocation3], 32
    $region9: #{tpu_custom_call.1} parent=1 // pred_fallthru
      _
    %v23 = vld [vmem:[#allocation2] sm:$0x3]
    %v24 = vmul.f32 %v23, %v23
    %v25 = vlaneseq
    %v26 = vshrl.u32 %v25, 7
    %v27 = vadd.s32 %v26, 8
    %v28 = vadd.s32 %v26, 16
    %v29 = vadd.s32 %v26, 24
    %v30 = vadd.s32 %v26, 32
    %v31 = vadd.s32 %v26, 40
    %v32 = vadd.s32 %v26, 48
    %v33 = vadd.s32 %v26, 56
    %v34 = vadd.s32 %v26, 64
    %v35 = vadd.s32 %v26, 72
    %v36 = vadd.s32 %v26, 80
    %v37 = vadd.s32 %v26, 88
    %v38 = vadd.s32 %v26, 96
    %v39 = vadd.s32 %v26, 104
    %v40 = vadd.s32 %v26, 112
    %v41 = vadd.s32 %v26, 120
    %v42 = vlaneseq
    %v43 = vand.u32 %v42, 127
    %v44 = vmul.u32 %v43, 32
    %vm45 = vcmp.ge.s32.totalorder %v26, %v44
    %vm46 = vcmp.ge.s32.totalorder %v27, %v44
    %vm47 = vcmp.ge.s32.totalorder %v28, %v44
    %vm48 = vcmp.ge.s32.totalorder %v29, %v44
    %vm49 = vcmp.ge.s32.totalorder %v30, %v44
    %vm50 = vcmp.ge.s32.totalorder %v31, %v44
    %vm51 = vcmp.ge.s32.totalorder %v32, %v44
    %vm52 = vcmp.ge.s32.totalorder %v33, %v44
    %vm53 = vcmp.ge.s32.totalorder %v34, %v44
    %vm54 = vcmp.ge.s32.totalorder %v35, %v44
    %vm55 = vcmp.ge.s32.totalorder %v36, %v44
    %vm56 = vcmp.ge.s32.totalorder %v37, %v44
    %vm57 = vcmp.ge.s32.totalorder %v38, %v44
    %vm58 = vcmp.ge.s32.totalorder %v39, %v44
    %vm59 = vcmp.ge.s32.totalorder %v40, %v44
    %vm60 = vcmp.ge.s32.totalorder %v41, %v44
    %v61 = vadd.s32 %v43, 1
    %v62 = vmul.u32 %v61, 32
    %vm63 = vcmp.lt.s32.totalorder %v26, %v62
    %vm64 = vcmp.lt.s32.totalorder %v27, %v62
    %vm65 = vcmp.lt.s32.totalorder %v28, %v62
    %vm66 = vcmp.lt.s32.totalorder %v29, %v62
    %vm67 = vcmp.lt.s32.totalorder %v30, %v62
    %vm68 = vcmp.lt.s32.totalorder %v31, %v62
    %vm69 = vcmp.lt.s32.totalorder %v32, %v62
    %vm70 = vcmp.lt.s32.totalorder %v33, %v62
    %vm71 = vcmp.lt.s32.totalorder %v34, %v62
    %vm72 = vcmp.lt.s32.totalorder %v35, %v62
    %vm73 = vcmp.lt.s32.totalorder %v36, %v62
    %vm74 = vcmp.lt.s32.totalorder %v37, %v62
    %vm75 = vcmp.lt.s32.totalorder %v38, %v62
    %vm76 = vcmp.lt.s32.totalorder %v39, %v62
    %vm77 = vcmp.lt.s32.totalorder %v40, %v62
    %vm78 = vcmp.lt.s32.totalorder %v41, %v62
    %vm79 = vmand %vm45, %vm63
    %vm80 = vmand %vm46, %vm64
    %vm81 = vmand %vm47, %vm65
    %vm82 = vmand %vm48, %vm66
    %vm83 = vmand %vm49, %vm67
    %vm84 = vmand %vm50, %vm68
    %vm85 = vmand %vm51, %vm69
    %vm86 = vmand %vm52, %vm70
    %vm87 = vmand %vm53, %vm71
    %vm88 = vmand %vm54, %vm72
    %vm89 = vmand %vm55, %vm73
    %vm90 = vmand %vm56, %vm74
    %vm91 = vmand %vm57, %vm75
    %vm92 = vmand %vm58, %vm76
    %vm93 = vmand %vm59, %vm77
    %vm94 = vmand %vm60, %vm78
    %v95 = vsel %vm79, -0.5, 0.0
    %v96 = vsel %vm80, -0.5, 0.0
    %v97 = vsel %vm81, -0.5, 0.0
    %v98 = vsel %vm82, -0.5, 0.0
    %v99 = vsel %vm83, -0.5, 0.0
    %v100 = vsel %vm84, -0.5, 0.0
    %v101 = vsel %vm85, -0.5, 0.0
    %v102 = vsel %vm86, -0.5, 0.0
    %v103 = vsel %vm87, -0.5, 0.0
    %v104 = vsel %vm88, -0.5, 0.0
    %v105 = vsel %vm89, -0.5, 0.0
    %v106 = vsel %vm90, -0.5, 0.0
    %v107 = vsel %vm91, -0.5, 0.0
    %v108 = vsel %vm92, -0.5, 0.0
    %v109 = vsel %vm93, -0.5, 0.0
    %v110 = vsel %vm94, -0.5, 0.0
    %v111 = vpack.c.bf16 %v96, %v95
    %v112 = vpack.c.bf16 %v98, %v97
    %v113 = vpack.c.bf16 %v100, %v99
    %v114 = vpack.c.bf16 %v102, %v101
    %v115 = vpack.c.bf16 %v104, %v103
    %v116 = vpack.c.bf16 %v106, %v105
    %v117 = vpack.c.bf16 %v108, %v107
    %v118 = vpack.c.bf16 %v110, %v109
    %v119 = vpack.c.bf16 %v24, %v24
    %120 = vmatpush.bf16.msra.mxu0 %v118
    %121 = vmatpush.bf16.msra.mxu0 %v117
    %122 = vmatpush.bf16.msra.mxu0 %v116
    %123 = vmatpush.bf16.msra.mxu0 %v115
    %124 = vmatpush.bf16.msra.mxu0 %v114
    %125 = vmatpush.bf16.msra.mxu0 %v113
    %126 = vmatpush.bf16.msra.mxu0 %v112
    %127 = vmatpush.bf16.msra.mxu0 %v111
    %128 = vmatmul.bf16.gmra.mxu0 %v119
    %v129 = vpop.f32.mrf.mxu0
    %v130 = vadd.f32 0.0, %v129
    %v131 = vpop.f32.mrf.mxu0
    %132 = vdwg.mxu0
    %v133 = vsub.f32 %v130, 29.406033
    %vm134 = vcmask 25600
    %135 = vst.msk [vmem:[#allocation5] sm:$0x3] %vm134, %v133
    // Predicated region
    $region10: #{tpu_custom_call.1} parent=1 // pred_check
      _
    $region11: #{tpu_custom_call.1} parent=1 // pred_check_branch
      %137 = sbr.rel (0) target = $region13
    $region12: #{tpu_custom_call.1} parent=1 // pred_region
      %139 = vsyncadd [#allocation4], 0
      %s141 = sshll.u32 [#allocation5], 4
      %s142 = int_to_ptr.vmem [resolvable:$true] %s141
      %s143 = sshll.u32 %s1, 4
      %s144 = int_to_ptr.hbm [resolvable:$true] %s143
      %146 = dma.vmem_to_hbm [thread:$0]  %s142, 32, %s144, [#allocation4]
    $region13: #{tpu_custom_call.1} parent=1 // pred_fallthru
      _
    // Predicated region
    $region14: #{tpu_custom_call.1} parent=1 // pred_check
      _
    $region15: #{tpu_custom_call.1} parent=1 // pred_check_branch
      %148 = sbr.rel (0) target = $region17
    $region16: #{tpu_custom_call.1} parent=1 // pred_region
      %150 = dma.done [#allocation4], 32
    $region17: #{tpu_custom_call.1} parent=1 // pred_fallthru
      _
    %151 = vsyncpa [#allocation3], 1
    %152 = vsyncpa [#allocation4], 1

</llo_original>
